<compile_context>
chip_gen: v6e
topology: v6e:2x2x1
jax: 0.10.0
libtpu: 0.0.40
codegen_flags: <defaults>
</compile_context>

<pallas_src>
import jax
import jax.numpy as jnp
from jax.experimental import pallas as pl
from jax.experimental.pallas import tpu as pltpu


def _round_up(x, m):
    return ((x + m - 1) // m) * m


def _rank_kernel(pos_ref, neg_ref, rank_ref):
    """Per-positive rank (positives on the lane axis).

    pos_ref  : (1,   TILE_P) positive score per lane (native dtype)
    neg_ref  : (num, TILE_P) negative scores per positive (native dtype)
    rank_ref : (1,   TILE_P) output rank (f32) = #{negatives strictly greater than pos}
    """
    pos = pos_ref[...]                                   # (1, TILE_P)
    neg = neg_ref[...]                                   # (num, TILE_P)
    # TODO(synk): reference breaks exact score ties with np.random.choice; here ties are
    # broken deterministically in favour of the positive (strict '>' comparison).
    greater = (neg > pos).astype(jnp.float32)            # (num, TILE_P)
    rank_ref[...] = jnp.sum(greater, axis=0, keepdims=True)   # XLU sublane reduce


def _metrics_from_rank(n, rank):
    """hit / ndcg per positive from the 0-based rank (exact math, f32)."""
    in_topn = rank < jnp.float32(n)
    sample_hit = in_topn.astype(jnp.float32)
    # dcg(1, rank+1) = (2^1 - 1) / log2(rank + 2); idcg = (2^1 - 1)/log2(2) = 1
    sample_ndcg = jnp.where(in_topn, 1.0 / jnp.log2(rank + 2.0), 0.0)
    return sample_hit, sample_ndcg


def _rank_jnp(pos_row, neg_rows_t):
    """Plain-JAX fallback (neg_rows_t is (num, num_pos))."""
    greater = (neg_rows_t > pos_row[None, :]).astype(jnp.float32)
    return jnp.sum(greater, axis=0)


def matrix_forward(n, num, predict_val, num_pos, index, use_pallas=None):
    """JAX/Pallas equivalent of Matrix.forward(n, num, predict_val, num_pos, index)."""
    dtype = predict_val.dtype          # stream scores in native dtype (bf16 stays bf16)
    itemsize = jnp.dtype(dtype).itemsize

    # --- glue: stable argsort of `index`, then INDEX-side reshape/transpose/pad so the
    #     neg scores are gathered from HBM exactly once, already in kernel layout. ---
    order = jnp.argsort(index, stable=True)
    pos_idx = order[:num_pos]                                                 # (P,)
    neg_idx = order[num_pos:num_pos + num_pos * num].reshape(num_pos, num).T  # (num, P)

    neg_bytes = num_pos * num * itemsize
    if use_pallas is None:
        # Size gate: pallas only once DMA time (not launch overhead) dominates.
        use_pallas = neg_bytes >= (2 << 20)

    # A single 128-lane-wide neg column block that would blow the VMEM budget -> fallback.
    if num * 128 * itemsize > (12 << 20):
        use_pallas = False

    if not use_pallas:
        pos_row = predict_val[pos_idx]
        neg_rows_t = predict_val[neg_idx]
        rank = _rank_jnp(pos_row, neg_rows_t)
        sample_hit, sample_ndcg = _metrics_from_rank(n, rank)
        return jnp.mean(sample_hit), jnp.mean(sample_ndcg), sample_hit, sample_ndcg

    # ---- byte-driven tiling of the positive (lane) axis: ~8 MiB neg blocks ----
    target_block_bytes = 8 * 1024 * 1024
    tile_p = (target_block_bytes // max(1, num * itemsize)) // 128 * 128
    tile_p = max(128, tile_p)
    tile_p = min(tile_p, _round_up(num_pos, 128))
    p_pad = _round_up(num_pos, tile_p)
    pad = p_pad - num_pos

    # Pad the index arrays (sentinel 0 -> gathers predict_val[0]; padded lanes are sliced
    # off before the mean, so their values never matter).
    pos_idx_p = jnp.pad(pos_idx, (0, pad))
    neg_idx_p = jnp.pad(neg_idx, ((0, 0), (0, pad)))
    pos_2d = predict_val[pos_idx_p][None, :]        # (1,   p_pad) in native dtype
    neg_2d = predict_val[neg_idx_p]                 # (num, p_pad) in native dtype, one pass

    # Explicit VMEM budget from the actual (double-buffered) block sizes; stays well
    # under v7x's 64 MiB physical / 32 MiB default scoped VMEM.
    neg_block_bytes = num * tile_p * itemsize
    pos_block_bytes = tile_p * itemsize
    out_block_bytes = tile_p * 4
    vmem_needed = 2 * (neg_block_bytes + pos_block_bytes + out_block_bytes) + (1 << 20)
    vmem_limit = int(min(max(vmem_needed, 16 << 20), 28 << 20))

    grid = (p_pad // tile_p,)

    rank_p = pl.pallas_call(
        _rank_kernel,
        out_shape=jax.ShapeDtypeStruct((1, p_pad), jnp.float32),
        grid=grid,
        in_specs=[
            pl.BlockSpec((1, tile_p), lambda i: (0, i)),
            pl.BlockSpec((num, tile_p), lambda i: (0, i)),
        ],
        out_specs=pl.BlockSpec((1, tile_p), lambda i: (0, i)),
        compiler_params=pltpu.CompilerParams(
            dimension_semantics=("parallel",),
            vmem_limit_bytes=vmem_limit,
        ),
    )(pos_2d, neg_2d)

    rank = rank_p[0, :num_pos]
    sample_hit, sample_ndcg = _metrics_from_rank(n, rank)
    return jnp.mean(sample_hit), jnp.mean(sample_ndcg), sample_hit, sample_ndcg


if __name__ == "__main__":
    # Small, forward-consistent shapes: num_pos positives, num negatives each.
    n = 5            # top-k cutoff
    num = 16         # negatives per positive
    num_pos = 256    # number of positives
    total = num_pos * (num + 1)   # 4352 scores total

    key = jax.random.PRNGKey(0)
    k_scores, k_index = jax.random.split(key)

    predict_val = jax.random.normal(k_scores, (total,), dtype=jnp.float32)
    # `index` plays the role of the original node/edge ids whose argsort reorders scores.
    index = jax.random.permutation(k_index, jnp.arange(total, dtype=jnp.int32))

    # Run the Pallas kernel path explicitly (shapes are below the production size gate).
    hits, ndcg, sample_hit, sample_ndcg = matrix_forward(
        n, num, predict_val, num_pos, index, use_pallas=True)
    jax.block_until_ready((hits, ndcg, sample_hit, sample_ndcg))

    # Cross-check against the plain-JAX reference path (exact math on both sides).
    hits_r, ndcg_r, hit_r, ndcg_s_r = matrix_forward(
        n, num, predict_val, num_pos, index, use_pallas=False)
    jax.block_until_ready((hits_r, ndcg_r))
    assert jnp.allclose(hits, hits_r, rtol=1e-5, atol=1e-5)
    assert jnp.allclose(ndcg, ndcg_r, rtol=1e-5, atol=1e-5)
    assert jnp.allclose(sample_hit, hit_r, rtol=1e-5, atol=1e-5)
    assert jnp.allclose(sample_ndcg, ndcg_s_r, rtol=1e-5, atol=1e-5)

    print("KERNEL_OK")
</pallas_src>

<mosaic_0001>
module attributes {stable_mosaic.version = 11 : i64} {
  func.func @_rank_kernel(%arg0: i32, %arg1: memref<1x256xf32, #tpu.memory_space<vmem>>, %arg2: memref<16x256xf32, #tpu.memory_space<vmem>>, %arg3: memref<1x256xf32, #tpu.memory_space<vmem>>) attributes {dimension_semantics = [#tpu.dimension_semantics<parallel>], iteration_bounds = array<i64: 1>, scalar_prefetch = 0 : i64, scratch_operands = 0 : i64, tpu.core_type = #tpu.core_type<tc>, window_params = [{transform_indices = @transform_0, window_bounds = array<i64: 1, 256>}, {transform_indices = @transform_1, window_bounds = array<i64: 16, 256>}, {transform_indices = @transform_2, window_bounds = array<i64: 1, 256>}]} {
    %c0 = arith.constant 0 : index
    %c0_0 = arith.constant 0 : index
    %0 = vector.load %arg1[%c0, %c0_0] : memref<1x256xf32, #tpu.memory_space<vmem>>, vector<1x256xf32>
    %c0_1 = arith.constant 0 : index
    %c0_2 = arith.constant 0 : index
    %1 = vector.load %arg2[%c0_1, %c0_2] : memref<16x256xf32, #tpu.memory_space<vmem>>, vector<16x256xf32>
    %2 = vector.broadcast %0 : vector<1x256xf32> to vector<16x256xf32>
    %3 = arith.cmpf ogt, %1, %2 : vector<16x256xf32>
    %4 = arith.extui %3 : vector<16x256xi1> to vector<16x256xi32>
    %5 = arith.sitofp %4 : vector<16x256xi32> to vector<16x256xf32>
    %cst = arith.constant dense<0.000000e+00> : vector<256xf32>
    %6 = vector.multi_reduction <add>, %5, %cst [0] : vector<16x256xf32> to vector<256xf32>
    %7 = vector.shape_cast %6 : vector<256xf32> to vector<1x256xf32>
    %c0_3 = arith.constant 0 : index
    %c0_4 = arith.constant 0 : index
    %8 = vector.load %arg3[%c0_3, %c0_4] : memref<1x256xf32, #tpu.memory_space<vmem>>, vector<1x256xf32>
    tpu.vector_store %arg3[%c0_3, %c0_4], %7 {strides = array<i32>} : memref<1x256xf32, #tpu.memory_space<vmem>>, vector<1x256xf32>,
    return
  }
  func.func @transform_0(%arg0: i32) -> (i32, i32) {
    %c0_i32 = arith.constant 0 : i32
    %c0_i32_0 = arith.constant 0 : i32
    return %c0_i32, %arg0 : i32, i32
  }
  func.func @transform_1(%arg0: i32) -> (i32, i32) {
    %c0_i32 = arith.constant 0 : i32
    %c0_i32_0 = arith.constant 0 : i32
    return %c0_i32, %arg0 : i32, i32
  }
  func.func @transform_2(%arg0: i32) -> (i32, i32) {
    %c0_i32 = arith.constant 0 : i32
    %c0_i32_0 = arith.constant 0 : i32
    return %c0_i32, %arg0 : i32, i32
  }
}

</mosaic_0001>

<llo_original>
// kernel: tpu_custom_call.1
$region0: #{tpu_custom_call.1}
  #allocation0 [shape = 'u32[]', space=smem, size = 0x4, offset = 0x4, fixed_abs, tag = 'smem constant byte address 0x4 - core index']
  #allocation1 [shape = 'u32[144,128]{1,0:T(1,128)}', space=vmem, size = 0x12000, scoped, tag = 'internal scratch']
  %s0 = inlined_call_operand.hbm [shape: f32[1,256], index: 0, kind: input, shape index: {}]
  %s1 = inlined_call_operand.hbm [shape: f32[16,256], index: 1, kind: input, shape index: {}]
  %s2 = inlined_call_operand.hbm [shape: f32[1,256], index: 2, kind: output, shape index: {}]
  %s3 = sld [smem:[#allocation0]]
  $region26: #{tpu_custom_call.1} parent=0
    _
  %s5 = ssub.s32 1, %s3
  %s6 = scalar_select 0, %s5, %s3
  $region1: #{tpu_custom_call.1} parent=0
    #allocation2 [shape = 'u8[1024]{0}', space=vmem, size = 0x400, scoped, tag = 'input window, operand 0, single buffered']
    #allocation3 [shape = 's32[1]{0}', space=sflag, size = 0x4, scoped, tag = 'scoped memory for tpu_custom_call.1']
    #allocation4 [shape = 's32[1]{0}', space=sflag, size = 0x4, scoped, tag = 'scoped memory for tpu_custom_call.1']
    #allocation5 [shape = 'u8[16384]{0}', space=vmem, size = 0x4000, scoped, tag = 'input window, operand 1, single buffered']
    #allocation6 [shape = 's32[1]{0}', space=sflag, size = 0x4, scoped, tag = 'scoped memory for tpu_custom_call.1']
    #allocation7 [shape = 'u8[1024]{0}', space=vmem, size = 0x400, scoped, tag = 'output window, operand 0, single buffered']
    %7 = vsyncpa [#allocation3], 0
    %8 = vsyncpa [#allocation6], 0
    %9 = vsyncpa [#allocation4], 0
    // Predicated region
    $region2: #{tpu_custom_call.1} parent=1 // pred_check
      _
    $region3: #{tpu_custom_call.1} parent=1 // pred_check_branch
      %11 = sbr.rel (0) target = $region5
    $region4: #{tpu_custom_call.1} parent=1 // pred_region
      %s13 = ssub.s32 32, 32
      %14 = vsyncadd [#allocation3], %s13
      %s16 = sshll.u32 [#allocation2], 4
      %s17 = int_to_ptr.vmem [resolvable:$true] %s16
      %19 = dma.hbm_to_vmem [thread:$0]  %s0, 32, %s17, [#allocation3]
    $region5: #{tpu_custom_call.1} parent=1 // pred_fallthru
      _
    // Predicated region
    $region6: #{tpu_custom_call.1} parent=1 // pred_check
      _
    $region7: #{tpu_custom_call.1} parent=1 // pred_check_branch
      %21 = sbr.rel (0) target = $region9
    $region8: #{tpu_custom_call.1} parent=1 // pred_region
      %s23 = ssub.s32 512, 512
      %24 = vsyncadd [#allocation6], %s23
      %s25 = sshll.u32 [#allocation5], 4
      %s26 = int_to_ptr.vmem [resolvable:$true] %s25
      %31 = dma.hbm_to_vmem [thread:$0]  %s1, 512, %s26, [#allocation6], 256, 256, 16
    $region9: #{tpu_custom_call.1} parent=1 // pred_fallthru
      _
    // Predicated region
    $region10: #{tpu_custom_call.1} parent=1 // pred_check
      _
    $region11: #{tpu_custom_call.1} parent=1 // pred_check_branch
      %33 = sbr.rel (0) target = $region13
    $region12: #{tpu_custom_call.1} parent=1 // pred_region
      %34 = dma.done [#allocation3], 32
    $region13: #{tpu_custom_call.1} parent=1 // pred_fallthru
      _
    // Predicated region
    $region14: #{tpu_custom_call.1} parent=1 // pred_check
      _
    $region15: #{tpu_custom_call.1} parent=1 // pred_check_branch
      %36 = sbr.rel (0) target = $region17
    $region16: #{tpu_custom_call.1} parent=1 // pred_region
      %37 = dma.done [#allocation6], 512
    $region17: #{tpu_custom_call.1} parent=1 // pred_fallthru
      _
    %v38 = vld [vmem:[#allocation2] sm:$0x3]
    %v39 = vld [vmem:[#allocation5] sm:$0xff]
    %v40 = vld [vmem:[#allocation5 + $0x8] sm:$0xff]
    %v41 = vld [vmem:[#allocation5 + $0x10] sm:$0xff]
    %v42 = vld [vmem:[#allocation5 + $0x18] sm:$0xff]
    %v44 = vlaneseq
    %v45 = vshrl.u32 %v44, 7
    %v46 = vsub.s32 0, %v45
    %v47 = vrot.slane %v38, %v46
    %v48 = vlaneseq
    %v49 = vshrl.u32 %v48, 7
    %v50 = vsub.s32 1, %v49
    %v51 = vrot.slane %v38, %v50
    %vm54 = vcmp.gt.f32.partialorder %v39, %v47
    %vm55 = vcmp.gt.f32.partialorder %v40, %v51
    %vm56 = vcmp.gt.f32.partialorder %v41, %v47
    %vm57 = vcmp.gt.f32.partialorder %v42, %v51
    %v58 = vsel %vm54, 1, 0
    %v59 = vsel %vm55, 1, 0
    %v60 = vsel %vm56, 1, 0
    %v61 = vsel %vm57, 1, 0
    %v62 = vcvt.s32.f32 %v58
    %v63 = vcvt.s32.f32 %v59
    %v64 = vcvt.s32.f32 %v60
    %v65 = vcvt.s32.f32 %v61
    %v66 = vadd.f32 %v62, %v64
    %v67 = vrot.slane %v66, 4
    %v68 = vadd.f32 %v66, %v67
    %v69 = vrot.slane %v68, 2
    %v70 = vadd.f32 %v68, %v69
    %v71 = vrot.slane %v70, 1
    %v72 = vadd.f32 %v70, %v71
    %v73 = vadd.f32 %v63, %v65
    %v74 = vrot.slane %v73, 4
    %v75 = vadd.f32 %v73, %v74
    %v76 = vrot.slane %v75, 2
    %v77 = vadd.f32 %v75, %v76
    %v78 = vrot.slane %v77, 1
    %v79 = vadd.f32 %v77, %v78
    %v82 = vcombine.low %v72, %v79
    %v84 = vunpack.c.l.s4 1966171168
    %v85 = vunpack.c.0.s8 %v84
    %v86 = vlaneseq
    %v87 = vshrl.u32 %v86, 7
    %v88 = vsub.s32 %v85, %v87
    %v89 = vrot.slane %v82, %v88
    %v91 = vunpack.c.l.s4 1966171168
    %v92 = vunpack.c.0.s8 %v91
    %v93 = vlaneseq
    %v94 = vshrl.u32 %v93, 7
    %v95 = vsub.s32 %v92, %v94
    %v96 = vrot.slane %v89, %v95
    %v98 = vlaneseq
    %vm99 = vcmp.ge.s32.totalorder %v98, 0
    %vm100 = vcmp.lt.s32.totalorder %v98, 256
    %vm101 = vmand %vm99, %vm100
    %102 = vst.msk [vmem:[#allocation7] sm:$0x3] %vm101, %v96
    // Predicated region
    $region18: #{tpu_custom_call.1} parent=1 // pred_check
      _
    $region19: #{tpu_custom_call.1} parent=1 // pred_check_branch
      %104 = sbr.rel (0) target = $region21
    $region20: #{tpu_custom_call.1} parent=1 // pred_region
      %s106 = ssub.s32 32, 32
      %107 = vsyncadd [#allocation4], %s106
      %s109 = sshll.u32 [#allocation7], 4
      %s110 = int_to_ptr.vmem [resolvable:$true] %s109
      %112 = dma.vmem_to_hbm [thread:$0]  %s110, 32, %s2, [#allocation4]
    $region21: #{tpu_custom_call.1} parent=1 // pred_fallthru
      _
    // Predicated region
    $region22: #{tpu_custom_call.1} parent=1 // pred_check
      _
    $region23: #{tpu_custom_call.1} parent=1 // pred_check_branch
      %114 = sbr.rel (0) target = $region25
    $region24: #{tpu_custom_call.1} parent=1 // pred_region
      %115 = dma.done [#allocation4], 32
    $region25: #{tpu_custom_call.1} parent=1 // pred_fallthru
      _
    %116 = vsyncpa [#allocation3], 1
    %117 = vsyncpa [#allocation6], 1
    %118 = vsyncpa [#allocation4], 1

</llo_original>
